<compile_context>
chip_gen: v7x
topology: tpu7x:2x2x1
jax: 0.10.0
libtpu: 0.0.40
codegen_flags: <defaults>
</compile_context>

<pallas_src>
import jax
import jax.numpy as jnp
from jax.experimental import pallas as pl
from jax.experimental.pallas import tpu as pltpu

LN_EPS = 1e-5  # PyTorch nn.LayerNorm default


def _make_norm_kernel(d_actual, d_padded):
    """Builds the LayerNorm kernel. ln_gain_mult is pre-folded into gamma/beta.

    x_ref: [TR, Dp]  block of rows (Dp = D padded to a multiple of 128)
    g_ref: [1, Dp]   gamma * ln_gain_mult (zero-padded)
    b_ref: [1, Dp]   beta  * ln_gain_mult (zero-padded)
    o_ref: [TR, Dp]  output block
    """

    def kernel(x_ref, g_ref, b_ref, o_ref):
        x = x_ref[...].astype(jnp.float32)  # widen for stable stats (matches torch f32)
        if d_actual == d_padded:
            # Fast path: hidden dim already lane-dense, plain two-pass LN.
            mean = jnp.mean(x, axis=-1, keepdims=True)
            xc = x - mean
            var = jnp.mean(xc * xc, axis=-1, keepdims=True)
        else:
            # Hidden dim was zero-padded; mask padded lanes out of the
            # statistics and divide by the true D.
            inv_d = 1.0 / float(d_actual)
            lane = jax.lax.broadcasted_iota(jnp.int32, x.shape, dimension=1)
            valid = lane < d_actual
            mean = jnp.sum(x, axis=-1, keepdims=True) * inv_d
            xc = jnp.where(valid, x - mean, 0.0)
            var = jnp.sum(xc * xc, axis=-1, keepdims=True) * inv_d
        inv = jax.lax.rsqrt(var + LN_EPS)
        o_ref[...] = (xc * inv * g_ref[...] + b_ref[...]).astype(o_ref.dtype)

    return kernel


def _device_kind():
    try:
        return jax.devices()[0].device_kind.lower()
    except Exception:  # pragma: no cover - defensive (e.g. odd backends)
        return ""


def _target_block_bytes(kind):
    # v7x: ~3.2 TB/s HBM -> bigger blocks keep the fixed per-step overhead <~7%,
    # and 2 double-buffered 8 MiB in+out blocks (32 MiB) + f32 temps stay under
    # the 48 MiB scoped limit / 64 MiB physical VMEM.
    if "v7" in kind:
        return 8 << 20
    return 4 << 20


def _num_tensorcores(kind):
    return 2 if "v7" in kind else 1


def _choose_row_tile(rows, d_padded, itemsize, *, target_block_bytes, num_cores):
    """Biggest row tile whose f32 working set hits the byte target.

    No jnp.pad is used: the grid is cdiv(rows, tile) and Pallas handles the
    partial last block, so the tile only needs to be a multiple of the sublane
    packing for the storage dtype.
    """
    min_rows = 8 if itemsize >= 4 else (16 if itemsize == 2 else 32)
    work_itemsize = max(itemsize, 4)  # stats are computed in f32
    t = target_block_bytes // max(1, d_padded * work_itemsize)
    t = max(min_rows, (t // min_rows) * min_rows)
    # Don't exceed the problem (rounded up to the sublane multiple).
    rows_rounded = pl.cdiv(rows, min_rows) * min_rows
    t = min(t, rows_rounded)
    # Multi-TensorCore chips only: try to give each core at least one block of
    # the single "parallel" axis, but never shrink below half the byte target
    # just to manufacture steps. Single-TC chips keep the biggest tile.
    if num_cores > 1:
        while (pl.cdiv(rows, t) < num_cores
               and t > min_rows
               and (t // 2) * d_padded * work_itemsize >= target_block_bytes // 2):
            t = max(min_rows, ((t // 2) // min_rows) * min_rows)
    return t


def decoder_forward(x, gamma, beta, *, ln_gain_mult, num_layers, row_tile=None):
    """JAX/Pallas equivalent of Decoder.forward.

    x: [B, S, D] float32 (or bf16)
    gamma, beta: [D] LayerNorm affine params
    """
    # --- layer stack ---
    # TODO(synk): sub-layer definition not provided; applied as identity. Once
    # the layer exists, fuse this LayerNorm into its epilogue (same pallas_call)
    # to save a full HBM read+write of x.
    for _ in range(num_layers):
        x = x

    B, S, D = x.shape
    rows = B * S
    x2d = x.reshape(rows, D)

    # Lane-dense hidden dim: pad D to a multiple of 128 only when needed so all
    # output stores are full-width vst. Stats are masked in-kernel.
    Dp = max(128, pl.cdiv(D, 128) * 128)
    if Dp != D:
        x2d = jnp.pad(x2d, ((0, 0), (0, Dp - D)))

    # Fold ln_gain_mult into the affine params once (O(D), a genuine hoist).
    g = gamma.astype(jnp.float32) * ln_gain_mult
    b = beta.astype(jnp.float32) * ln_gain_mult
    if Dp != D:
        g = jnp.pad(g, (0, Dp - D))
        b = jnp.pad(b, (0, Dp - D))
    g2d = g.reshape(1, Dp)
    b2d = b.reshape(1, Dp)

    kind = _device_kind()
    if row_tile is None:
        row_tile = _choose_row_tile(
            rows, Dp, x2d.dtype.itemsize,
            target_block_bytes=_target_block_bytes(kind),
            num_cores=_num_tensorcores(kind))

    # No row padding: Pallas pads the last partial block's reads and masks its
    # stores; per-row LN means garbage rows never touch valid output.
    grid = (pl.cdiv(rows, row_tile),)

    out2d = pl.pallas_call(
        _make_norm_kernel(D, Dp),
        out_shape=jax.ShapeDtypeStruct((rows, Dp), x.dtype),
        grid_spec=pl.GridSpec(
            grid=grid,
            in_specs=[
                pl.BlockSpec((row_tile, Dp), lambda i: (i, 0)),
                pl.BlockSpec((1, Dp), lambda i: (0, 0)),
                pl.BlockSpec((1, Dp), lambda i: (0, 0)),
            ],
            out_specs=pl.BlockSpec((row_tile, Dp), lambda i: (i, 0)),
        ),
        compiler_params=pltpu.CompilerParams(
            dimension_semantics=("parallel",),
            vmem_limit_bytes=48 << 20,  # fits v7x (64 MiB physical) and lifts v5e/v6e defaults
        ),
    )(x2d, g2d, b2d)

    if Dp != D:
        out2d = out2d[:, :D]
    return out2d.reshape(B, S, D)


def _reference(x, gamma, beta, *, ln_gain_mult, num_layers):
    """Pure-JAX reference for correctness checking."""
    for _ in range(num_layers):
        x = x
    xf = x.astype(jnp.float32)
    mean = jnp.mean(xf, axis=-1, keepdims=True)
    var = jnp.mean((xf - mean) ** 2, axis=-1, keepdims=True)
    y = (xf - mean) / jnp.sqrt(var + LN_EPS) * gamma + beta
    return (ln_gain_mult * y).astype(x.dtype)


if __name__ == "__main__":
    # Small shapes consistent with the module (layer.size == hidden dim).
    # hidden = 128 keeps the output lane-dense (full-width stores).
    B, S, D = 2, 8, 128
    N_LAYERS = 2
    LN_GAIN_MULT = 1.5

    key = jax.random.PRNGKey(0)
    kx, kg, kb = jax.random.split(key, 3)
    x = jax.random.normal(kx, (B, S, D), dtype=jnp.float32)
    # Non-trivial affine params to exercise gamma/beta paths.
    gamma = 1.0 + 0.1 * jax.random.normal(kg, (D,), dtype=jnp.float32)
    beta = 0.1 * jax.random.normal(kb, (D,), dtype=jnp.float32)

    out = decoder_forward(
        x, gamma, beta, ln_gain_mult=LN_GAIN_MULT, num_layers=N_LAYERS
    )
    out = jax.block_until_ready(out)

    ref = _reference(
        x, gamma, beta, ln_gain_mult=LN_GAIN_MULT, num_layers=N_LAYERS
    )
    assert out.shape == (B, S, D)
    assert jnp.allclose(out, ref, atol=1e-5, rtol=1e-5), "mismatch vs reference"

    print("KERNEL_OK")
</pallas_src>

<mosaic_0001>
module attributes {stable_mosaic.version = 11 : i64} {
  func.func @kernel(%arg0: i32, %arg1: memref<16x128xf32, #tpu.memory_space<vmem>>, %arg2: memref<1x128xf32, #tpu.memory_space<vmem>>, %arg3: memref<1x128xf32, #tpu.memory_space<vmem>>, %arg4: memref<16x128xf32, #tpu.memory_space<vmem>>) attributes {dimension_semantics = [#tpu.dimension_semantics<parallel>], iteration_bounds = array<i64: 1>, scalar_prefetch = 0 : i64, scratch_operands = 0 : i64, tpu.core_type = #tpu.core_type<tc>, window_params = [{transform_indices = @transform_0, window_bounds = array<i64: 16, 128>}, {pipeline_mode = #tpu.pipeline_mode<synchronous>, transform_indices = @transform_1, window_bounds = array<i64: 1, 128>}, {pipeline_mode = #tpu.pipeline_mode<synchronous>, transform_indices = @transform_2, window_bounds = array<i64: 1, 128>}, {transform_indices = @transform_3, window_bounds = array<i64: 16, 128>}]} {
    %c0 = arith.constant 0 : index
    %c0_0 = arith.constant 0 : index
    %0 = vector.load %arg1[%c0, %c0_0] : memref<16x128xf32, #tpu.memory_space<vmem>>, vector<16x128xf32>
    %cst = arith.constant dense<0.000000e+00> : vector<16xf32>
    %1 = vector.multi_reduction <add>, %0, %cst [1] : vector<16x128xf32> to vector<16xf32>
    %2 = vector.shape_cast %1 : vector<16xf32> to vector<16x1xf32>
    %cst_1 = arith.constant 1.280000e+02 : f32
    %3 = vector.broadcast %cst_1 : f32 to vector<16x1xf32>
    %4 = arith.divf %2, %3 : vector<16x1xf32>
    %5 = vector.broadcast %4 : vector<16x1xf32> to vector<16x128xf32>
    %6 = arith.subf %0, %5 : vector<16x128xf32>
    %7 = arith.mulf %6, %6 : vector<16x128xf32>
    %cst_2 = arith.constant dense<0.000000e+00> : vector<16xf32>
    %8 = vector.multi_reduction <add>, %7, %cst_2 [1] : vector<16x128xf32> to vector<16xf32>
    %9 = vector.shape_cast %8 : vector<16xf32> to vector<16x1xf32>
    %cst_3 = arith.constant 1.280000e+02 : f32
    %10 = vector.broadcast %cst_3 : f32 to vector<16x1xf32>
    %11 = arith.divf %9, %10 : vector<16x1xf32>
    %cst_4 = arith.constant 9.99999974E-6 : f32
    %12 = vector.broadcast %cst_4 : f32 to vector<16x1xf32>
    %13 = arith.addf %11, %12 : vector<16x1xf32>
    %14 = math.rsqrt %13 : vector<16x1xf32>
    %15 = vector.broadcast %14 : vector<16x1xf32> to vector<16x128xf32>
    %16 = arith.mulf %6, %15 : vector<16x128xf32>
    %c0_5 = arith.constant 0 : index
    %c0_6 = arith.constant 0 : index
    %17 = vector.load %arg2[%c0_5, %c0_6] : memref<1x128xf32, #tpu.memory_space<vmem>>, vector<1x128xf32>
    %18 = vector.broadcast %17 : vector<1x128xf32> to vector<16x128xf32>
    %19 = arith.mulf %16, %18 : vector<16x128xf32>
    %c0_7 = arith.constant 0 : index
    %c0_8 = arith.constant 0 : index
    %20 = vector.load %arg3[%c0_7, %c0_8] : memref<1x128xf32, #tpu.memory_space<vmem>>, vector<1x128xf32>
    %21 = vector.broadcast %20 : vector<1x128xf32> to vector<16x128xf32>
    %22 = arith.addf %19, %21 : vector<16x128xf32>
    %c0_9 = arith.constant 0 : index
    %c0_10 = arith.constant 0 : index
    %23 = vector.load %arg4[%c0_9, %c0_10] : memref<16x128xf32, #tpu.memory_space<vmem>>, vector<16x128xf32>
    tpu.vector_store %arg4[%c0_9, %c0_10], %22 {strides = array<i32>} : memref<16x128xf32, #tpu.memory_space<vmem>>, vector<16x128xf32>,
    return
  }
  func.func @transform_0(%arg0: i32) -> (i32, i32) {
    %c0_i32 = arith.constant 0 : i32
    %c0_i32_0 = arith.constant 0 : i32
    return %arg0, %c0_i32 : i32, i32
  }
  func.func @transform_1(%arg0: i32) -> (i32, i32) {
    %c0_i32 = arith.constant 0 : i32
    %c0_i32_0 = arith.constant 0 : i32
    %c0_i32_1 = arith.constant 0 : i32
    return %c0_i32, %c0_i32_0 : i32, i32
  }
  func.func @transform_2(%arg0: i32) -> (i32, i32) {
    %c0_i32 = arith.constant 0 : i32
    %c0_i32_0 = arith.constant 0 : i32
    %c0_i32_1 = arith.constant 0 : i32
    return %c0_i32, %c0_i32_0 : i32, i32
  }
  func.func @transform_3(%arg0: i32) -> (i32, i32) {
    %c0_i32 = arith.constant 0 : i32
    %c0_i32_0 = arith.constant 0 : i32
    return %arg0, %c0_i32 : i32, i32
  }
}

</mosaic_0001>

<llo_original>
// kernel: tpu_custom_call.1
$region0: #{tpu_custom_call.1}
  #allocation0 [shape = 'u32[]', space=smem, size = 0x4, offset = 0x4, fixed_abs, tag = 'smem constant byte address 0x4 - core index']
  #allocation1 [shape = 'u32[144,128]{1,0:T(1,128)}', space=vmem, size = 0x12000, scoped, tag = 'internal scratch']
  %s0 = inlined_call_operand.hbm [shape: f32[16,128], index: 0, kind: input, shape index: {}]
  %s1 = inlined_call_operand.vmem [shape: f32[1,128], index: 1, kind: input, shape index: {}]
  %s2 = inlined_call_operand.vmem [shape: f32[1,128], index: 2, kind: input, shape index: {}]
  %s3 = inlined_call_operand.hbm [shape: f32[16,128], index: 3, kind: output, shape index: {}]
  %s4 = sld [smem:[#allocation0]]
  $region26: #{tpu_custom_call.1} parent=0
    _
  %s6 = ssub.s32 1, %s4
  %s7 = scalar_select 0, %s6, %s4
  $region1: #{tpu_custom_call.1} parent=0
    #allocation2 [shape = 'u8[8192]{0}', space=vmem, size = 0x2000, scoped, tag = 'input window, operand 0, single buffered']
    #allocation3 [shape = 's32[1]{0}', space=sflag, size = 0x4, scoped, tag = 'scoped memory for tpu_custom_call.1']
    #allocation4 [shape = 's32[1]{0}', space=sflag, size = 0x4, scoped, tag = 'scoped memory for tpu_custom_call.1']
    #allocation5 [shape = 'u8[8192]{0}', space=vmem, size = 0x2000, scoped, tag = 'output window, operand 0, single buffered']
    %8 = vsyncpa [#allocation3], 0
    %9 = vsyncpa [#allocation4], 0
    // Predicated region
    $region2: #{tpu_custom_call.1} parent=1 // pred_check
      _
    $region3: #{tpu_custom_call.1} parent=1 // pred_check_branch
      %11 = sbr.rel (0) target = $region5
    $region4: #{tpu_custom_call.1} parent=1 // pred_region
      %s13 = ssub.s32 256, 256
      %14 = vsyncadd [#allocation3], %s13
      %s15 = sshll.u32 [#allocation2], 4
      %s16 = int_to_ptr.vmem [resolvable:$true] %s15
      %21 = dma.hbm_to_vmem [thread:$0]  %s0, 256, %s16, [#allocation3], 128, 128, 8
    $region5: #{tpu_custom_call.1} parent=1 // pred_fallthru
      _
    // Predicated region
    $region6: #{tpu_custom_call.1} parent=1 // pred_check
      _
    $region7: #{tpu_custom_call.1} parent=1 // pred_check_branch
      %23 = sbr.rel (0) target = $region9
    $region8: #{tpu_custom_call.1} parent=1 // pred_region
      _
    $region9: #{tpu_custom_call.1} parent=1 // pred_fallthru
      _
    // Predicated region
    $region10: #{tpu_custom_call.1} parent=1 // pred_check
      _
    $region11: #{tpu_custom_call.1} parent=1 // pred_check_branch
      %25 = sbr.rel (0) target = $region13
    $region12: #{tpu_custom_call.1} parent=1 // pred_region
      _
    $region13: #{tpu_custom_call.1} parent=1 // pred_fallthru
      _
    // Predicated region
    $region14: #{tpu_custom_call.1} parent=1 // pred_check
      _
    $region15: #{tpu_custom_call.1} parent=1 // pred_check_branch
      %27 = sbr.rel (0) target = $region17
    $region16: #{tpu_custom_call.1} parent=1 // pred_region
      %28 = dma.done [#allocation3], 256
    $region17: #{tpu_custom_call.1} parent=1 // pred_fallthru
      _
    %v29 = vld [vmem:[#allocation2] sm:$0xff]
    %v30 = vld [vmem:[#allocation2 + $0x8] sm:$0xff]
    %31 = vadd.xlane.f32.xlu0 %v29
    %v32 = vpop.xlane.xlu0 %31
    %33 = vadd.xlane.f32.xlu0 %v30
    %v34 = vpop.xlane.xlu0 %33
    %v35 = vrcp.pop 128.0
    %v36 = vmul.f32 %v32, %v35
    %v37 = vmul.f32 %v34, %v35
    %v38 = vsub.f32 %v29, %v36
    %v39 = vsub.f32 %v30, %v37
    %v40 = vmul.f32 %v38, %v38
    %v41 = vmul.f32 %v39, %v39
    %42 = vadd.xlane.f32.xlu0 %v40
    %v43 = vpop.xlane.xlu0 %42
    %44 = vadd.xlane.f32.xlu0 %v41
    %v45 = vpop.xlane.xlu0 %44
    %v46 = vmul.f32 %v43, %v35
    %v47 = vmul.f32 %v45, %v35
    %v48 = vadd.f32 %v46, 1e-05
    %v49 = vadd.f32 %v47, 1e-05
    %v50 = vrsqrt.pop %v48
    %v51 = vrsqrt.pop %v49
    %v52 = vmul.f32 %v38, %v50
    %v53 = vmul.f32 %v39, %v51
    %v54 = vld [vmem:[%s1] sm:$0x1]
    %v56 = vlaneseq
    %v57 = vshrl.u32 %v56, 7
    %v58 = vsub.s32 0, %v57
    %v59 = vrot.slane %v54, %v58
    %v61 = vmul.f32 %v52, %v59
    %v62 = vmul.f32 %v53, %v59
    %v63 = vld [vmem:[%s2] sm:$0x1]
    %v65 = vlaneseq
    %v66 = vshrl.u32 %v65, 7
    %v67 = vsub.s32 0, %v66
    %v68 = vrot.slane %v63, %v67
    %v70 = vadd.f32 %v61, %v68
    %v71 = vadd.f32 %v62, %v68
    %72 = vst [vmem:[#allocation5] sm:$0xff] %v70
    %73 = vst [vmem:[#allocation5 + $0x8] sm:$0xff] %v71
    // Predicated region
    $region18: #{tpu_custom_call.1} parent=1 // pred_check
      _
    $region19: #{tpu_custom_call.1} parent=1 // pred_check_branch
      %75 = sbr.rel (0) target = $region21
    $region20: #{tpu_custom_call.1} parent=1 // pred_region
      %s77 = ssub.s32 256, 256
      %78 = vsyncadd [#allocation4], %s77
      %s79 = sshll.u32 [#allocation5], 4
      %s80 = int_to_ptr.vmem [resolvable:$true] %s79
      %85 = dma.vmem_to_hbm [thread:$0]  %s80, 256, %s3, [#allocation4], 128, 128, 8
    $region21: #{tpu_custom_call.1} parent=1 // pred_fallthru
      _
    // Predicated region
    $region22: #{tpu_custom_call.1} parent=1 // pred_check
      _
    $region23: #{tpu_custom_call.1} parent=1 // pred_check_branch
      %87 = sbr.rel (0) target = $region25
    $region24: #{tpu_custom_call.1} parent=1 // pred_region
      %88 = dma.done [#allocation4], 256
    $region25: #{tpu_custom_call.1} parent=1 // pred_fallthru
      _
    %89 = vsyncpa [#allocation3], 1
    %90 = vsyncpa [#allocation4], 1

</llo_original>
